<compile_context>
chip_gen: v6e
topology: v6e:2x2x1
jax: 0.10.0
libtpu: 0.0.40
codegen_flags: <defaults>
</compile_context>

<pallas_src>
import functools
import math

import jax
import jax.numpy as jnp
from jax import lax
from jax.experimental import pallas as pl
from jax.experimental.pallas import tpu as pltpu

D = 128  # feature dim of the projection model

_PARALLEL = pltpu.CompilerParams(dimension_semantics=("parallel",))


def _round_up(x, m):
    return ((x + m - 1) // m) * m


# ----------------------------------------------------------------------------
# Kernels
# ----------------------------------------------------------------------------
def _mlp_kernel(x_ref, w1_ref, b1_ref, w2_ref, b2_ref, o_ref):
    # one (TM, 128) row tile per grid step; bf16 MXU operands, f32 accumulate
    x = x_ref[...].astype(jnp.bfloat16)
    w1 = w1_ref[...].astype(jnp.bfloat16)
    w2 = w2_ref[...].astype(jnp.bfloat16)
    b1 = b1_ref[...]  # f32 (1, 128)
    b2 = b2_ref[...]
    h = jnp.dot(x, w1, preferred_element_type=jnp.float32) + b1
    h = jnp.maximum(h, 0.0)
    y = jnp.dot(h.astype(jnp.bfloat16), w2, preferred_element_type=jnp.float32) + b2
    o_ref[...] = y.astype(o_ref.dtype)


def _masked_rowmax_sub(logits, bt_valid):
    # mask padded target columns (static check: only emitted when padding exists)
    if bt_valid < logits.shape[1]:
        col = lax.broadcasted_iota(jnp.int32, logits.shape, 1)
        logits = jnp.where(col < bt_valid, logits, -jnp.inf)
    return logits - jnp.max(logits, axis=1, keepdims=True)


def _logits_kernel(anchor_ref, target_ref, w_ref, o_ref, *, bt_valid):
    # reassociated: logits = (anchor @ W) @ target^T  (transpose folded into
    # dot_general contracting dims -> no XLU transpose of target)
    a = anchor_ref[...].astype(jnp.bfloat16)
    t = target_ref[...].astype(jnp.bfloat16)
    w = w_ref[...].astype(jnp.bfloat16)
    aw = jnp.dot(a, w, preferred_element_type=jnp.float32)  # (TA, 128) f32
    logits = lax.dot_general(
        aw.astype(jnp.bfloat16), t,
        dimension_numbers=(((1,), (1,)), ((), ())),
        preferred_element_type=jnp.float32)                 # (TA, Btp)
    o_ref[...] = _masked_rowmax_sub(logits, bt_valid).astype(o_ref.dtype)


def _fused_kernel(a_ref, t_ref, w1_ref, b1_ref, w2_ref, b2_ref, w_ref, o_ref,
                  *, bt_valid):
    # encode(anchor_tile), encode(target), logits — all in VMEM, one launch
    w1 = w1_ref[...].astype(jnp.bfloat16)
    w2 = w2_ref[...].astype(jnp.bfloat16)
    b1 = b1_ref[...]
    b2 = b2_ref[...]

    def encode(x):
        h = jnp.dot(x.astype(jnp.bfloat16), w1,
                    preferred_element_type=jnp.float32) + b1
        h = jnp.maximum(h, 0.0)
        return jnp.dot(h.astype(jnp.bfloat16), w2,
                       preferred_element_type=jnp.float32) + b2

    ea = encode(a_ref[...])
    et = encode(t_ref[...])
    aw = jnp.dot(ea.astype(jnp.bfloat16), w_ref[...].astype(jnp.bfloat16),
                 preferred_element_type=jnp.float32)
    logits = lax.dot_general(
        aw.astype(jnp.bfloat16), et.astype(jnp.bfloat16),
        dimension_numbers=(((1,), (1,)), ((), ())),
        preferred_element_type=jnp.float32)
    o_ref[...] = _masked_rowmax_sub(logits, bt_valid).astype(o_ref.dtype)


# ----------------------------------------------------------------------------
# Wrappers
# ----------------------------------------------------------------------------
def projection_forward(res, params, detach=False, *, tile_m=512):
    """res: (B, 128) f32 -> (B, 128) f32.  Gridded over row tiles of size TM."""
    B = res.shape[0]
    TM = min(tile_m, _round_up(B, 8))
    Bp = _round_up(B, TM)
    if Bp != B:
        res = jnp.pad(res, ((0, Bp - B), (0, 0)))
    out = pl.pallas_call(
        _mlp_kernel,
        out_shape=jax.ShapeDtypeStruct((Bp, D), jnp.float32),
        grid=(Bp // TM,),
        in_specs=[
            pl.BlockSpec((TM, D), lambda i: (i, 0)),   # res row tile
            pl.BlockSpec((D, D), lambda i: (0, 0)),    # w1 (in, out)
            pl.BlockSpec((1, D), lambda i: (0, 0)),    # b1
            pl.BlockSpec((D, D), lambda i: (0, 0)),    # w2 (in, out)
            pl.BlockSpec((1, D), lambda i: (0, 0)),    # b2
        ],
        out_specs=pl.BlockSpec((TM, D), lambda i: (i, 0)),
        compiler_params=_PARALLEL,
    )(res, params["w1"], params["b1"], params["w2"], params["b2"])
    out = out[:B] if Bp != B else out
    return lax.stop_gradient(out) if detach else out


def compute_logits(encoded_anchor, encoded_target, params, *, tile_a=256):
    """anchor: (Ba, 128), target: (Bt, 128) -> logits (Ba, Bt), row-max subtracted."""
    Ba, Bt = encoded_anchor.shape[0], encoded_target.shape[0]
    TA = min(tile_a, _round_up(Ba, 8))
    Bap = _round_up(Ba, TA)
    Btp = _round_up(Bt, 128)          # lane-dense output, unmasked stores
    if Bap != Ba:
        encoded_anchor = jnp.pad(encoded_anchor, ((0, Bap - Ba), (0, 0)))
    if Btp != Bt:
        encoded_target = jnp.pad(encoded_target, ((0, Btp - Bt), (0, 0)))
    out = pl.pallas_call(
        functools.partial(_logits_kernel, bt_valid=Bt),
        out_shape=jax.ShapeDtypeStruct((Bap, Btp), jnp.float32),
        grid=(Bap // TA,),
        in_specs=[
            pl.BlockSpec((TA, D), lambda i: (i, 0)),     # anchor row tile
            pl.BlockSpec((Btp, D), lambda i: (0, 0)),    # full target (Bt untiled)
            pl.BlockSpec((D, D), lambda i: (0, 0)),      # W
        ],
        out_specs=pl.BlockSpec((TA, Btp), lambda i: (i, 0)),
        compiler_params=_PARALLEL,
    )(encoded_anchor, encoded_target, params["W"])
    return out[:Ba, :Bt]


def encode_and_compute_logits(anchor_res, target_res, params, *, tile_a=256):
    """Fused forward(anchor), forward(target), compute_logits in one launch."""
    Ba, Bt = anchor_res.shape[0], target_res.shape[0]
    TA = min(tile_a, _round_up(Ba, 8))
    Bap = _round_up(Ba, TA)
    Btp = _round_up(Bt, 128)
    if Bap != Ba:
        anchor_res = jnp.pad(anchor_res, ((0, Bap - Ba), (0, 0)))
    if Btp != Bt:
        target_res = jnp.pad(target_res, ((0, Btp - Bt), (0, 0)))
    out = pl.pallas_call(
        functools.partial(_fused_kernel, bt_valid=Bt),
        out_shape=jax.ShapeDtypeStruct((Bap, Btp), jnp.float32),
        grid=(Bap // TA,),
        in_specs=[
            pl.BlockSpec((TA, D), lambda i: (i, 0)),     # raw anchor row tile
            pl.BlockSpec((Btp, D), lambda i: (0, 0)),    # raw target (full)
            pl.BlockSpec((D, D), lambda i: (0, 0)),      # w1
            pl.BlockSpec((1, D), lambda i: (0, 0)),      # b1
            pl.BlockSpec((D, D), lambda i: (0, 0)),      # w2
            pl.BlockSpec((1, D), lambda i: (0, 0)),      # b2
            pl.BlockSpec((D, D), lambda i: (0, 0)),      # W
        ],
        out_specs=pl.BlockSpec((TA, Btp), lambda i: (i, 0)),
        compiler_params=_PARALLEL,
    )(anchor_res, target_res, params["w1"], params["b1"],
      params["w2"], params["b2"], params["W"])
    return out[:Ba, :Bt]


# ----------------------------------------------------------------------------
# Deterministic parameter init (matches nn.Linear default ranges / torch.rand)
# ----------------------------------------------------------------------------
def init_params(key):
    k1, k2, k3, k4, k5 = jax.random.split(key, 5)
    bound = 1.0 / math.sqrt(D)
    # Linear weights stored pre-transposed to (in, out)
    w1 = jax.random.uniform(k1, (D, D), jnp.float32, -bound, bound)
    b1 = jax.random.uniform(k2, (1, D), jnp.float32, -bound, bound)
    w2 = jax.random.uniform(k3, (D, D), jnp.float32, -bound, bound)
    b2 = jax.random.uniform(k4, (1, D), jnp.float32, -bound, bound)
    W = jax.random.uniform(k5, (D, D), jnp.float32, 0.0, 1.0)  # torch.rand
    return {"w1": w1, "b1": b1, "w2": w2, "b2": b2, "W": W}


# ----------------------------------------------------------------------------
# References (same bf16-operand / f32-accumulate math, plain JAX)
# ----------------------------------------------------------------------------
def _encode_ref(x, p):
    h = jnp.dot(x.astype(jnp.bfloat16), p["w1"].astype(jnp.bfloat16),
                preferred_element_type=jnp.float32) + p["b1"]
    h = jnp.maximum(h, 0.0)
    return jnp.dot(h.astype(jnp.bfloat16), p["w2"].astype(jnp.bfloat16),
                   preferred_element_type=jnp.float32) + p["b2"]


def _logits_ref(a, t, p):
    aw = jnp.dot(a.astype(jnp.bfloat16), p["W"].astype(jnp.bfloat16),
                 preferred_element_type=jnp.float32)
    logits = jnp.dot(aw.astype(jnp.bfloat16), t.astype(jnp.bfloat16).T,
                     preferred_element_type=jnp.float32)
    return logits - jnp.max(logits, axis=1, keepdims=True)


if __name__ == "__main__":
    key = jax.random.PRNGKey(0)
    pkey, xkey, akey, tkey, x2key, a2key, t2key = jax.random.split(key, 7)
    params = init_params(pkey)

    # --- small contrastive-sized case (single tile) ---
    B = 8
    res = jax.random.normal(xkey, (B, D), jnp.float32)
    out = jax.block_until_ready(projection_forward(res, params))
    assert out.shape == (B, D)
    assert jnp.allclose(out, _encode_ref(res, params), atol=1e-2, rtol=1e-2)

    anchor = jax.random.normal(akey, (B, D), jnp.float32)
    target = jax.random.normal(tkey, (B, D), jnp.float32)
    logits = jax.block_until_ready(compute_logits(anchor, target, params))
    assert logits.shape == (B, B)
    assert jnp.allclose(logits, _logits_ref(anchor, target, params),
                        atol=0.5, rtol=1e-2)

    # --- larger, non-aligned case exercising the grid + padding/masking path ---
    Ba, Bt = 384, 200
    res2 = jax.random.normal(x2key, (Ba, D), jnp.float32)
    out2 = jax.block_until_ready(projection_forward(res2, params))
    assert out2.shape == (Ba, D)
    assert jnp.allclose(out2, _encode_ref(res2, params), atol=1e-2, rtol=1e-2)

    a2 = jax.random.normal(a2key, (Ba, D), jnp.float32)
    t2 = jax.random.normal(t2key, (Bt, D), jnp.float32)
    lg2 = jax.block_until_ready(compute_logits(a2, t2, params))
    assert lg2.shape == (Ba, Bt)
    assert jnp.allclose(lg2, _logits_ref(a2, t2, params), atol=0.5, rtol=1e-2)

    # --- fused encode + logits (one launch, intermediates stay in VMEM) ---
    fused = jax.block_until_ready(encode_and_compute_logits(a2, t2, params))
    fused_ref = _logits_ref(_encode_ref(a2, params), _encode_ref(t2, params), params)
    assert fused.shape == (Ba, Bt)
    assert jnp.allclose(fused, fused_ref, atol=0.5, rtol=1e-2)

    print("KERNEL_OK")
</pallas_src>

<mosaic_0001>
module attributes {stable_mosaic.version = 11 : i64} {
  func.func @_mlp_kernel(%arg0: i32, %arg1: memref<8x128xf32, #tpu.memory_space<vmem>>, %arg2: memref<128x128xf32, #tpu.memory_space<vmem>>, %arg3: memref<1x128xf32, #tpu.memory_space<vmem>>, %arg4: memref<128x128xf32, #tpu.memory_space<vmem>>, %arg5: memref<1x128xf32, #tpu.memory_space<vmem>>, %arg6: memref<8x128xf32, #tpu.memory_space<vmem>>) attributes {dimension_semantics = [#tpu.dimension_semantics<parallel>], iteration_bounds = array<i64: 1>, scalar_prefetch = 0 : i64, scratch_operands = 0 : i64, tpu.core_type = #tpu.core_type<tc>, window_params = [{transform_indices = @transform_0, window_bounds = array<i64: 8, 128>}, {pipeline_mode = #tpu.pipeline_mode<synchronous>, transform_indices = @transform_1, window_bounds = array<i64: 128, 128>}, {pipeline_mode = #tpu.pipeline_mode<synchronous>, transform_indices = @transform_2, window_bounds = array<i64: 1, 128>}, {pipeline_mode = #tpu.pipeline_mode<synchronous>, transform_indices = @transform_3, window_bounds = array<i64: 128, 128>}, {pipeline_mode = #tpu.pipeline_mode<synchronous>, transform_indices = @transform_4, window_bounds = array<i64: 1, 128>}, {transform_indices = @transform_5, window_bounds = array<i64: 8, 128>}]} {
    %c0 = arith.constant 0 : index
    %c0_0 = arith.constant 0 : index
    %0 = vector.load %arg1[%c0, %c0_0] : memref<8x128xf32, #tpu.memory_space<vmem>>, vector<8x128xf32>
    %1 = arith.truncf %0 : vector<8x128xf32> to vector<8x128xbf16>
    %c0_1 = arith.constant 0 : index
    %c0_2 = arith.constant 0 : index
    %2 = vector.load %arg2[%c0_1, %c0_2] : memref<128x128xf32, #tpu.memory_space<vmem>>, vector<128x128xf32>
    %3 = arith.truncf %2 : vector<128x128xf32> to vector<128x128xbf16>
    %c0_3 = arith.constant 0 : index
    %c0_4 = arith.constant 0 : index
    %4 = vector.load %arg4[%c0_3, %c0_4] : memref<128x128xf32, #tpu.memory_space<vmem>>, vector<128x128xf32>
    %5 = arith.truncf %4 : vector<128x128xf32> to vector<128x128xbf16>
    %c0_5 = arith.constant 0 : index
    %c0_6 = arith.constant 0 : index
    %6 = vector.load %arg3[%c0_5, %c0_6] : memref<1x128xf32, #tpu.memory_space<vmem>>, vector<1x128xf32>
    %c0_7 = arith.constant 0 : index
    %c0_8 = arith.constant 0 : index
    %7 = vector.load %arg5[%c0_7, %c0_8] : memref<1x128xf32, #tpu.memory_space<vmem>>, vector<1x128xf32>
    %cst = arith.constant dense<0.000000e+00> : vector<8x128xf32>
    %8 = tpu.matmul %1, %3, %cst {dimension_numbers = #tpu.dot_dimension_numbers<[1], [0], [0], [1], [0, 0, 1, 1], [], []>} : vector<8x128xbf16>, vector<128x128xbf16>, vector<8x128xf32> -> vector<8x128xf32>
    %9 = vector.broadcast %6 : vector<1x128xf32> to vector<8x128xf32>
    %10 = arith.addf %8, %9 : vector<8x128xf32>
    %cst_9 = arith.constant 0.000000e+00 : f32
    %11 = vector.broadcast %cst_9 : f32 to vector<8x128xf32>
    %12 = arith.maximumf %10, %11 : vector<8x128xf32>
    %13 = arith.truncf %12 : vector<8x128xf32> to vector<8x128xbf16>
    %cst_10 = arith.constant dense<0.000000e+00> : vector<8x128xf32>
    %14 = tpu.matmul %13, %5, %cst_10 {dimension_numbers = #tpu.dot_dimension_numbers<[1], [0], [0], [1], [0, 0, 1, 1], [], []>} : vector<8x128xbf16>, vector<128x128xbf16>, vector<8x128xf32> -> vector<8x128xf32>
    %15 = vector.broadcast %7 : vector<1x128xf32> to vector<8x128xf32>
    %16 = arith.addf %14, %15 : vector<8x128xf32>
    %c0_11 = arith.constant 0 : index
    %c0_12 = arith.constant 0 : index
    %17 = vector.load %arg6[%c0_11, %c0_12] : memref<8x128xf32, #tpu.memory_space<vmem>>, vector<8x128xf32>
    tpu.vector_store %arg6[%c0_11, %c0_12], %16 {strides = array<i32>} : memref<8x128xf32, #tpu.memory_space<vmem>>, vector<8x128xf32>,
    return
  }
  func.func @transform_0(%arg0: i32) -> (i32, i32) {
    %c0_i32 = arith.constant 0 : i32
    %c0_i32_0 = arith.constant 0 : i32
    return %arg0, %c0_i32 : i32, i32
  }
  func.func @transform_1(%arg0: i32) -> (i32, i32) {
    %c0_i32 = arith.constant 0 : i32
    %c0_i32_0 = arith.constant 0 : i32
    %c0_i32_1 = arith.constant 0 : i32
    return %c0_i32, %c0_i32_0 : i32, i32
  }
  func.func @transform_2(%arg0: i32) -> (i32, i32) {
    %c0_i32 = arith.constant 0 : i32
    %c0_i32_0 = arith.constant 0 : i32
    %c0_i32_1 = arith.constant 0 : i32
    return %c0_i32, %c0_i32_0 : i32, i32
  }
  func.func @transform_3(%arg0: i32) -> (i32, i32) {
    %c0_i32 = arith.constant 0 : i32
    %c0_i32_0 = arith.constant 0 : i32
    %c0_i32_1 = arith.constant 0 : i32
    return %c0_i32, %c0_i32_0 : i32, i32
  }
  func.func @transform_4(%arg0: i32) -> (i32, i32) {
    %c0_i32 = arith.constant 0 : i32
    %c0_i32_0 = arith.constant 0 : i32
    %c0_i32_1 = arith.constant 0 : i32
    return %c0_i32, %c0_i32_0 : i32, i32
  }
  func.func @transform_5(%arg0: i32) -> (i32, i32) {
    %c0_i32 = arith.constant 0 : i32
    %c0_i32_0 = arith.constant 0 : i32
    return %arg0, %c0_i32 : i32, i32
  }
}

</mosaic_0001>

<llo_original>
// kernel: tpu_custom_call.1
$region0: #{tpu_custom_call.1}
  #allocation0 [shape = 'u32[]', space=smem, size = 0x4, offset = 0x4, fixed_abs, tag = 'smem constant byte address 0x4 - core index']
  #allocation1 [shape = 'u32[144,128]{1,0:T(1,128)}', space=vmem, size = 0x12000, scoped, tag = 'internal scratch']
  %s0 = inlined_call_operand.hbm [shape: f32[8,128], index: 0, kind: input, shape index: {}]
  %s1 = inlined_call_operand.hbm [shape: f32[128,128], index: 1, kind: input, shape index: {}]
  %s2 = inlined_call_operand.vmem [shape: f32[1,128], index: 2, kind: input, shape index: {}]
  %s3 = inlined_call_operand.hbm [shape: f32[128,128], index: 3, kind: input, shape index: {}]
  %s4 = inlined_call_operand.vmem [shape: f32[1,128], index: 4, kind: input, shape index: {}]
  %s5 = inlined_call_operand.hbm [shape: f32[8,128], index: 5, kind: output, shape index: {}]
  %s6 = sld [smem:[#allocation0]]
  $region42: #{tpu_custom_call.1} parent=0
    _
  %s8 = ssub.s32 1, %s6
  %s9 = scalar_select 0, %s8, %s6
  $region1: #{tpu_custom_call.1} parent=0
    #allocation2 [shape = 'u8[4096]{0}', space=vmem, size = 0x1000, scoped, tag = 'input window, operand 0, single buffered']
    #allocation3 [shape = 's32[1]{0}', space=sflag, size = 0x4, scoped, tag = 'scoped memory for tpu_custom_call.1']
    #allocation4 [shape = 's32[1]{0}', space=sflag, size = 0x4, scoped, tag = 'scoped memory for tpu_custom_call.1']
    #allocation5 [shape = 'u8[65536]{0}', space=vmem, size = 0x10000, scoped, tag = 'input window, operand 1, single buffered']
    #allocation6 [shape = 's32[1]{0}', space=sflag, size = 0x4, scoped, tag = 'scoped memory for tpu_custom_call.1']
    #allocation7 [shape = 'u8[65536]{0}', space=vmem, size = 0x10000, scoped, tag = 'input window, operand 3, single buffered']
    #allocation8 [shape = 'u8[4096]{0}', space=vmem, size = 0x1000, scoped, tag = 'output window, operand 0, single buffered']
    %10 = vsyncpa [#allocation3], 0
    %11 = vsyncpa [#allocation6], 0
    %12 = vsyncpa [#allocation4], 0
    // Predicated region
    $region2: #{tpu_custom_call.1} parent=1 // pred_check
      _
    $region3: #{tpu_custom_call.1} parent=1 // pred_check_branch
      %14 = sbr.rel (0) target = $region5
    $region4: #{tpu_custom_call.1} parent=1 // pred_region
      %s16 = ssub.s32 128, 128
      %17 = vsyncadd [#allocation3], %s16
      %s19 = sshll.u32 [#allocation2], 4
      %s20 = int_to_ptr.vmem [resolvable:$true] %s19
      %22 = dma.hbm_to_vmem [thread:$0]  %s0, 128, %s20, [#allocation3]
    $region5: #{tpu_custom_call.1} parent=1 // pred_fallthru
      _
    // Predicated region
    $region6: #{tpu_custom_call.1} parent=1 // pred_check
      _
    $region7: #{tpu_custom_call.1} parent=1 // pred_check_branch
      %24 = sbr.rel (0) target = $region9
    $region8: #{tpu_custom_call.1} parent=1 // pred_region
      %s26 = ssub.s32 2048, 2048
      %27 = vsyncadd [#allocation6], %s26
      %s28 = sshll.u32 [#allocation5], 4
      %s29 = int_to_ptr.vmem [resolvable:$true] %s28
      %34 = dma.hbm_to_vmem [thread:$0]  %s1, 2048, %s29, [#allocation6], 128, 128, 8
    $region9: #{tpu_custom_call.1} parent=1 // pred_fallthru
      _
    // Predicated region
    $region10: #{tpu_custom_call.1} parent=1 // pred_check
      _
    $region11: #{tpu_custom_call.1} parent=1 // pred_check_branch
      %36 = sbr.rel (0) target = $region13
    $region12: #{tpu_custom_call.1} parent=1 // pred_region
      _
    $region13: #{tpu_custom_call.1} parent=1 // pred_fallthru
      _
    // Predicated region
    $region14: #{tpu_custom_call.1} parent=1 // pred_check
      _
    $region15: #{tpu_custom_call.1} parent=1 // pred_check_branch
      %38 = sbr.rel (0) target = $region17
    $region16: #{tpu_custom_call.1} parent=1 // pred_region
      %s40 = ssub.s32 2048, 2048
      %41 = vsyncadd [#allocation6], %s40
      %s42 = sshll.u32 [#allocation7], 4
      %s43 = int_to_ptr.vmem [resolvable:$true] %s42
      %48 = dma.hbm_to_vmem [thread:$0]  %s3, 2048, %s43, [#allocation6], 128, 128, 8
    $region17: #{tpu_custom_call.1} parent=1 // pred_fallthru
      _
    // Predicated region
    $region18: #{tpu_custom_call.1} parent=1 // pred_check
      _
    $region19: #{tpu_custom_call.1} parent=1 // pred_check_branch
      %50 = sbr.rel (0) target = $region21
    $region20: #{tpu_custom_call.1} parent=1 // pred_region
      _
    $region21: #{tpu_custom_call.1} parent=1 // pred_fallthru
      _
    // Predicated region
    $region22: #{tpu_custom_call.1} parent=1 // pred_check
      _
    $region23: #{tpu_custom_call.1} parent=1 // pred_check_branch
      %52 = sbr.rel (0) target = $region25
    $region24: #{tpu_custom_call.1} parent=1 // pred_region
      %53 = dma.done [#allocation3], 128
    $region25: #{tpu_custom_call.1} parent=1 // pred_fallthru
      _
    // Predicated region
    $region26: #{tpu_custom_call.1} parent=1 // pred_check
      _
    $region27: #{tpu_custom_call.1} parent=1 // pred_check_branch
      %55 = sbr.rel (0) target = $region29
    $region28: #{tpu_custom_call.1} parent=1 // pred_region
      %56 = dma.done [#allocation6], 2048
    $region29: #{tpu_custom_call.1} parent=1 // pred_fallthru
      _
    // Predicated region
    $region30: #{tpu_custom_call.1} parent=1 // pred_check
      _
    $region31: #{tpu_custom_call.1} parent=1 // pred_check_branch
      %58 = sbr.rel (0) target = $region33
    $region32: #{tpu_custom_call.1} parent=1 // pred_region
      %59 = dma.done [#allocation6], 2048
    $region33: #{tpu_custom_call.1} parent=1 // pred_fallthru
      _
    %v61 = vld [vmem:[#allocation2] sm:$0xff]
    %v62 = vpack.c.bf16 %v61, %v61
    %v63 = vld [vmem:[#allocation5] sm:$0xff]
    %v64 = vld [vmem:[#allocation5 + $0x8] sm:$0xff]
    %v65 = vld [vmem:[#allocation5 + $0x10] sm:$0xff]
    %v66 = vld [vmem:[#allocation5 + $0x18] sm:$0xff]
    %v67 = vld [vmem:[#allocation5 + $0x20] sm:$0xff]
    %v68 = vld [vmem:[#allocation5 + $0x28] sm:$0xff]
    %v69 = vld [vmem:[#allocation5 + $0x30] sm:$0xff]
    %v70 = vld [vmem:[#allocation5 + $0x38] sm:$0xff]
    %v71 = vld [vmem:[#allocation5 + $0x40] sm:$0xff]
    %v72 = vld [vmem:[#allocation5 + $0x48] sm:$0xff]
    %v73 = vld [vmem:[#allocation5 + $0x50] sm:$0xff]
    %v74 = vld [vmem:[#allocation5 + $0x58] sm:$0xff]
    %v75 = vld [vmem:[#allocation5 + $0x60] sm:$0xff]
    %v76 = vld [vmem:[#allocation5 + $0x68] sm:$0xff]
    %v77 = vld [vmem:[#allocation5 + $0x70] sm:$0xff]
    %v78 = vld [vmem:[#allocation5 + $0x78] sm:$0xff]
    %v79 = vpack.c.bf16 %v64, %v63
    %v80 = vpack.c.bf16 %v66, %v65
    %v81 = vpack.c.bf16 %v68, %v67
    %v82 = vpack.c.bf16 %v70, %v69
    %v83 = vpack.c.bf16 %v72, %v71
    %v84 = vpack.c.bf16 %v74, %v73
    %v85 = vpack.c.bf16 %v76, %v75
    %v86 = vpack.c.bf16 %v78, %v77
    %v87 = vld [vmem:[#allocation7] sm:$0xff]
    %v88 = vld [vmem:[#allocation7 + $0x8] sm:$0xff]
    %v89 = vld [vmem:[#allocation7 + $0x10] sm:$0xff]
    %v90 = vld [vmem:[#allocation7 + $0x18] sm:$0xff]
    %v91 = vld [vmem:[#allocation7 + $0x20] sm:$0xff]
    %v92 = vld [vmem:[#allocation7 + $0x28] sm:$0xff]
    %v93 = vld [vmem:[#allocation7 + $0x30] sm:$0xff]
    %v94 = vld [vmem:[#allocation7 + $0x38] sm:$0xff]
    %v95 = vld [vmem:[#allocation7 + $0x40] sm:$0xff]
    %v96 = vld [vmem:[#allocation7 + $0x48] sm:$0xff]
    %v97 = vld [vmem:[#allocation7 + $0x50] sm:$0xff]
    %v98 = vld [vmem:[#allocation7 + $0x58] sm:$0xff]
    %v99 = vld [vmem:[#allocation7 + $0x60] sm:$0xff]
    %v100 = vld [vmem:[#allocation7 + $0x68] sm:$0xff]
    %v101 = vld [vmem:[#allocation7 + $0x70] sm:$0xff]
    %v102 = vld [vmem:[#allocation7 + $0x78] sm:$0xff]
    %v103 = vpack.c.bf16 %v88, %v87
    %v104 = vpack.c.bf16 %v90, %v89
    %v105 = vpack.c.bf16 %v92, %v91
    %v106 = vpack.c.bf16 %v94, %v93
    %v107 = vpack.c.bf16 %v96, %v95
    %v108 = vpack.c.bf16 %v98, %v97
    %v109 = vpack.c.bf16 %v100, %v99
    %v110 = vpack.c.bf16 %v102, %v101
    %v111 = vld [vmem:[%s2] sm:$0x1]
    %v112 = vld [vmem:[%s4] sm:$0x1]
    %v114 = vlaneseq
    %v115 = vshrl.u32 %v114, 7
    %v116 = vsub.s32 0, %v115
    %v117 = vrot.slane %v111, %v116
    %119 = vmatprep.subr.bf16.mxu0 0
    %120 = vmatpush1.bf16.msra.mxu0 %v86
    %121 = vmatprep.subr.bf16.mxu0 0
    %122 = vmatpush1.bf16.msra.mxu0 %v85
    %123 = vmatprep.subr.bf16.mxu0 0
    %124 = vmatpush1.bf16.msra.mxu0 %v84
    %125 = vmatprep.subr.bf16.mxu0 0
    %126 = vmatpush1.bf16.msra.mxu0 %v83
    %127 = vmatprep.subr.bf16.mxu0 0
    %128 = vmatpush1.bf16.msra.mxu0 %v82
    %129 = vmatprep.subr.bf16.mxu0 0
    %130 = vmatpush1.bf16.msra.mxu0 %v81
    %131 = vmatprep.subr.bf16.mxu0 0
    %132 = vmatpush1.bf16.msra.mxu0 %v80
    %133 = vmatprep.subr.bf16.mxu0 0
    %134 = vmatpush1.bf16.msra.mxu0 %v79
    %135 = vmatprep.subr.bf16.mxu0 0
    %136 = vmatpush2.bf16.msra.mxu0 0
    %137 = vmatprep.subr.bf16.mxu0 0
    %138 = vmatpush2.bf16.msra.mxu0 0
    %139 = vmatprep.subr.bf16.mxu0 0
    %140 = vmatpush2.bf16.msra.mxu0 0
    %141 = vmatprep.subr.bf16.mxu0 0
    %142 = vmatpush2.bf16.msra.mxu0 0
    %143 = vmatprep.subr.bf16.mxu0 0
    %144 = vmatpush2.bf16.msra.mxu0 0
    %145 = vmatprep.subr.bf16.mxu0 0
    %146 = vmatpush2.bf16.msra.mxu0 0
    %147 = vmatprep.subr.bf16.mxu0 0
    %148 = vmatpush2.bf16.msra.mxu0 0
    %149 = vmatprep.subr.bf16.mxu0 0
    %150 = vmatpush2.bf16.msra.mxu0 0
    %151 = vmatprep.mubr.bf16.mxu0 0
    %152 = vmatmul.mubr.bf16.gmra.mxu0 %v62
    %v153 = vpop.f32.mrf.mxu0
    %v154 = vadd.f32 %v117, %v153
    %v155 = vpop.f32.mrf.mxu0
    %v156 = vpop.f32.mrf.mxu0
    %v157 = vpop.f32.mrf.mxu0
    %158 = vdwg.mxu0
    %v159 = vmax.f32 %v154, 0.0
    %v160 = vpack.c.bf16 %v159, %v159
    %v162 = vlaneseq
    %v163 = vshrl.u32 %v162, 7
    %v164 = vsub.s32 0, %v163
    %v165 = vrot.slane %v112, %v164
    %167 = vmatprep.subr.bf16.mxu0 0
    %168 = vmatpush1.bf16.msra.mxu0 %v110
    %169 = vmatprep.subr.bf16.mxu0 0
    %170 = vmatpush1.bf16.msra.mxu0 %v109
    %171 = vmatprep.subr.bf16.mxu0 0
    %172 = vmatpush1.bf16.msra.mxu0 %v108
    %173 = vmatprep.subr.bf16.mxu0 0
    %174 = vmatpush1.bf16.msra.mxu0 %v107
    %175 = vmatprep.subr.bf16.mxu0 0
    %176 = vmatpush1.bf16.msra.mxu0 %v106
    %177 = vmatprep.subr.bf16.mxu0 0
    %178 = vmatpush1.bf16.msra.mxu0 %v105
    %179 = vmatprep.subr.bf16.mxu0 0
    %180 = vmatpush1.bf16.msra.mxu0 %v104
    %181 = vmatprep.subr.bf16.mxu0 0
    %182 = vmatpush1.bf16.msra.mxu0 %v103
    %183 = vmatprep.subr.bf16.mxu0 0
    %184 = vmatpush2.bf16.msra.mxu0 0
    %185 = vmatprep.subr.bf16.mxu0 0
    %186 = vmatpush2.bf16.msra.mxu0 0
    %187 = vmatprep.subr.bf16.mxu0 0
    %188 = vmatpush2.bf16.msra.mxu0 0
    %189 = vmatprep.subr.bf16.mxu0 0
    %190 = vmatpush2.bf16.msra.mxu0 0
    %191 = vmatprep.subr.bf16.mxu0 0
    %192 = vmatpush2.bf16.msra.mxu0 0
    %193 = vmatprep.subr.bf16.mxu0 0
    %194 = vmatpush2.bf16.msra.mxu0 0
    %195 = vmatprep.subr.bf16.mxu0 0
    %196 = vmatpush2.bf16.msra.mxu0 0
    %197 = vmatprep.subr.bf16.mxu0 0
    %198 = vmatpush2.bf16.msra.mxu0 0
    %199 = vmatprep.mubr.bf16.mxu0 0
    %200 = vmatmul.mubr.bf16.gmra.mxu0 %v160
    %v201 = vpop.f32.mrf.mxu0
    %v202 = vadd.f32 %v165, %v201
    %v203 = vpop.f32.mrf.mxu0
    %v204 = vpop.f32.mrf.mxu0
    %v205 = vpop.f32.mrf.mxu0
    %206 = vdwg.mxu0
    %207 = vst [vmem:[#allocation8] sm:$0xff] %v202
    // Predicated region
    $region34: #{tpu_custom_call.1} parent=1 // pred_check
      _
    $region35: #{tpu_custom_call.1} parent=1 // pred_check_branch
      %209 = sbr.rel (0) target = $region37
    $region36: #{tpu_custom_call.1} parent=1 // pred_region
      %s211 = ssub.s32 128, 128
      %212 = vsyncadd [#allocation4], %s211
      %s214 = sshll.u32 [#allocation8], 4
      %s215 = int_to_ptr.vmem [resolvable:$true] %s214
      %217 = dma.vmem_to_hbm [thread:$0]  %s215, 128, %s5, [#allocation4]
    $region37: #{tpu_custom_call.1} parent=1 // pred_fallthru
      _
    // Predicated region
    $region38: #{tpu_custom_call.1} parent=1 // pred_check
      _
    $region39: #{tpu_custom_call.1} parent=1 // pred_check_branch
      %219 = sbr.rel (0) target = $region41
    $region40: #{tpu_custom_call.1} parent=1 // pred_region
      %220 = dma.done [#allocation4], 128
    $region41: #{tpu_custom_call.1} parent=1 // pred_fallthru
      _
    %221 = vsyncpa [#allocation3], 1
    %222 = vsyncpa [#allocation6], 1
    %223 = vsyncpa [#allocation4], 1

</llo_original>
